<compile_context>
chip_gen: v7x
topology: tpu7x:2x2x1
jax: 0.10.0
libtpu: 0.0.40
codegen_flags: <defaults>
</compile_context>

<pallas_src>
import functools
from typing import NamedTuple

import jax
import jax.numpy as jnp
from jax.experimental import pallas as pl
from jax.experimental.pallas import tpu as pltpu


def _round_up(x, m):
    return (x + m - 1) // m * m


class NextWordParams(NamedTuple):
    emb_table: jax.Array   # (vocab, emb_dim)        f32
    w1: jax.Array          # (block_size*emb_dim, H) bf16
    b1: jax.Array          # (1, H)                  f32
    w2: jax.Array          # (H, vocab_p)            bf16  (pre-padded, pre-cast)
    b2: jax.Array          # (1, vocab_p)            f32   (pre-padded)
    tn: int                # vocab tile (multiple of 128, divides vocab_p)
    vocab: int             # true (unpadded) vocab size


def _choose_tn(hidden, vocab):
    """Lane-dense vocab tile so each streamed w2 tile DMA is ~2 MiB."""
    vocab_p128 = _round_up(max(vocab, 128), 128)
    tn = _round_up(pl.cdiv(2 << 20, 2 * hidden), 128)     # ~2 MiB of bf16 w2 / step
    tn = max(1024, min(tn, 4096))                         # sane lane-dense range
    # Keep the double-buffered streamed w2 tile comfortably inside scoped VMEM.
    tn_vmem = max(128, ((12 << 20) // (4 * hidden)) // 128 * 128)
    return min(tn, tn_vmem, vocab_p128)


def prepare_params(emb_table, w1, b1, w2, b2, *, tn=None):
    """One-time parameter prep (run OUTSIDE the jitted forward).

    Casts matmul weights to bf16 and zero-pads w2/b2 to a multiple of the vocab
    tile once, so no per-call cast/pad of the dominant w2 stream is needed.
    """
    hidden, vocab = w2.shape
    if tn is None:
        tn = _choose_tn(hidden, vocab)
    tn = max(128, _round_up(int(tn), 128))
    tn = min(tn, _round_up(vocab, 128))
    vocab_p = _round_up(vocab, tn)
    if vocab_p != vocab:
        w2 = jnp.pad(w2, ((0, 0), (0, vocab_p - vocab)))
        b2 = jnp.pad(b2, (0, vocab_p - vocab))
    return NextWordParams(
        emb_table=jnp.asarray(emb_table, jnp.float32),
        w1=jnp.asarray(w1, jnp.bfloat16),
        b1=jnp.asarray(b1, jnp.float32).reshape(1, -1),
        w2=jnp.asarray(w2, jnp.bfloat16),
        b2=jnp.asarray(b2, jnp.float32).reshape(1, -1),
        tn=int(tn),
        vocab=int(vocab),
    )


def _mlp_kernel(x_ref, w1_ref, b1_ref, w2_ref, b2_ref, o_ref):
    # x_ref:  (B, D_in)   bf16  resident across all vocab tiles
    # w1_ref: (D_in, H)   bf16  resident
    # b1_ref: (1, H)      f32   resident
    # w2_ref: (H, TN)     bf16  streamed per vocab tile (dominant HBM stream)
    # b2_ref: (1, TN)     f32   streamed
    # o_ref:  (B, TN)           lane-dense output tile
    #
    # Recompute h per tile (B*D_in*H is tiny) so the vocab axis carries no state.
    h = jnp.dot(x_ref[...], w1_ref[...], preferred_element_type=jnp.float32)
    h = jnp.maximum(h + b1_ref[...], 0.0)                  # f32 bias + ReLU epilogue
    out = jnp.dot(h.astype(w2_ref.dtype), w2_ref[...],
                  preferred_element_type=jnp.float32)
    o_ref[...] = (out + b2_ref[...]).astype(o_ref.dtype)


@functools.partial(
    jax.jit,
    static_argnames=("tn", "vocab", "out_dtype", "single_buffer_resident"))
def _forward(tokens, emb_table, w1, b1, w2, b2, *, tn, vocab, out_dtype,
             single_buffer_resident):
    B = tokens.shape[0]

    # Glue: embedding gather + flatten  (x = emb(x); x = x.view(B, -1)).
    # TODO(synk): jnp.take clamps out-of-range token ids (torch Embedding raises).
    x = jnp.take(emb_table, tokens, axis=0).reshape(B, -1).astype(jnp.bfloat16)

    d_in = x.shape[1]
    hidden = w1.shape[1]
    vocab_p = w2.shape[1]
    assert vocab_p % tn == 0, (vocab_p, tn)
    n_tiles = vocab_p // tn
    out_itemsize = jnp.dtype(out_dtype).itemsize

    # Resident inputs never change block -> single-buffer them when supported
    # (halves resident VMEM; matters once d_in*hidden is large, esp. v7x 64 MiB).
    resident_kw = ({"pipeline_mode": pl.Buffered(1)}
                   if single_buffer_resident else {})
    resident_bufs = 1 if single_buffer_resident else 2

    # Raise the scoped-VMEM limit only when the footprint actually needs it;
    # stay below v7x's 64 MiB physical VMEM.
    vmem_need = (resident_bufs * (B * d_in * 2 + d_in * hidden * 2 + hidden * 4)
                 + 2 * (hidden * tn * 2 + tn * 4 + B * tn * out_itemsize))
    vmem_need = int(vmem_need * 1.25) + (2 << 20)          # compiler-scratch headroom
    vmem_limit = min(vmem_need, 56 << 20) if vmem_need > (16 << 20) else None

    flops = 2 * B * (d_in * hidden * n_tiles + hidden * vocab_p)
    bytes_accessed = (x.size * 2 + w1.size * 2 + b1.size * 4 +
                      w2.size * 2 + b2.size * 4 + B * vocab_p * out_itemsize)

    out = pl.pallas_call(
        _mlp_kernel,
        out_shape=jax.ShapeDtypeStruct((B, vocab_p), out_dtype),
        grid=(n_tiles,),
        in_specs=[
            pl.BlockSpec((B, d_in), lambda j: (0, 0), **resident_kw),       # x
            pl.BlockSpec((d_in, hidden), lambda j: (0, 0), **resident_kw),  # w1
            pl.BlockSpec((1, hidden), lambda j: (0, 0), **resident_kw),     # b1
            pl.BlockSpec((hidden, tn), lambda j: (0, j)),                   # w2 tile
            pl.BlockSpec((1, tn), lambda j: (0, j)),                        # b2 tile
        ],
        out_specs=pl.BlockSpec((B, tn), lambda j: (0, j)),   # lane-dense out tile
        compiler_params=pltpu.CompilerParams(
            # TODO(synk): pltpu.CORE_PARALLEL here on v7x to engage both TCs.
            dimension_semantics=("parallel",),
            vmem_limit_bytes=vmem_limit),
        cost_estimate=pl.CostEstimate(
            flops=flops, transcendentals=0, bytes_accessed=bytes_accessed),
    )(x, w1, b1, w2, b2)

    if vocab_p != vocab:                 # only when the vocab genuinely needed padding
        out = out[:, :vocab]
    return out


_SINGLE_BUFFER_OK = True                 # flipped off if pl.Buffered(1) is rejected


def next_word_forward(tokens, params: NextWordParams, *, out_dtype=jnp.float32):
    """logits = lin2(relu(lin1(flatten(emb(tokens))))),  shape (B, vocab)."""
    global _SINGLE_BUFFER_OK
    args = (tokens, params.emb_table, params.w1, params.b1, params.w2, params.b2)
    kw = dict(tn=params.tn, vocab=params.vocab, out_dtype=out_dtype)
    if _SINGLE_BUFFER_OK:
        try:
            return _forward(*args, single_buffer_resident=True, **kw)
        except Exception:
            # BlockSpec.pipeline_mode / pl.Buffered unsupported on this jax/libtpu:
            # fall back to default double-buffered resident inputs.
            _SINGLE_BUFFER_OK = False
    return _forward(*args, single_buffer_resident=False, **kw)


def init_params(key, vocab_size, emb_dim, block_size, hidden_size):
    """Deterministic synthetic parameters matching NextWord.__init__ shapes."""
    k_emb, k_w1, k_b1, k_w2, k_b2 = jax.random.split(key, 5)
    d_in = block_size * emb_dim
    emb_table = jax.random.normal(k_emb, (vocab_size, emb_dim), jnp.float32)
    # Stored as (in, out); nn.Linear stores (out, in) and applies x @ W.T.
    w1 = jax.random.normal(k_w1, (d_in, hidden_size), jnp.float32) * 0.02
    b1 = jax.random.normal(k_b1, (hidden_size,), jnp.float32) * 0.02
    w2 = jax.random.normal(k_w2, (hidden_size, vocab_size), jnp.float32) * 0.02
    b2 = jax.random.normal(k_b2, (vocab_size,), jnp.float32) * 0.02
    return emb_table, w1, b1, w2, b2


if __name__ == "__main__":
    # Small shapes consistent with the module.
    batch = 8
    block_size = 8
    emb_dim = 16          # -> d_in = 128
    hidden_size = 128
    vocab_size = 256

    key = jax.random.PRNGKey(0)
    k_params, k_tok = jax.random.split(key)
    emb_table, w1, b1, w2, b2 = init_params(
        k_params, vocab_size, emb_dim, block_size, hidden_size)
    tokens = jax.random.randint(
        k_tok, (batch, block_size), 0, vocab_size, dtype=jnp.int32)

    # tn=128 forces a 2-step vocab grid at the toy vocab (256) so the streamed
    # w2/b2/out specs are actually exercised; tn=None is the production
    # auto-sizing path (single 256-wide tile here -> no padding, no slice).
    params_small = prepare_params(emb_table, w1, b1, w2, b2, tn=128)
    params_auto = prepare_params(emb_table, w1, b1, w2, b2)

    logits = next_word_forward(tokens, params_small)
    jax.block_until_ready(logits)
    assert logits.shape == (batch, vocab_size)

    logits_auto = next_word_forward(tokens, params_auto)
    jax.block_until_ready(logits_auto)
    assert logits_auto.shape == (batch, vocab_size)
    assert jnp.allclose(logits, logits_auto, atol=1e-5, rtol=1e-5)

    # Reference 1: same bf16-operand / f32-accumulate recipe in plain JAX.
    x_ref = jnp.take(emb_table, tokens, axis=0).reshape(batch, -1)
    h_bf = jnp.dot(x_ref.astype(jnp.bfloat16), w1.astype(jnp.bfloat16),
                   preferred_element_type=jnp.float32)
    h_bf = jnp.maximum(h_bf + b1, 0.0)
    ref_bf = jnp.dot(h_bf.astype(jnp.bfloat16), w2.astype(jnp.bfloat16),
                     preferred_element_type=jnp.float32) + b2
    assert jnp.allclose(logits, ref_bf, atol=2e-3, rtol=2e-3)

    # Reference 2: full-f32 semantics of the original module (loose tolerance;
    # differences come only from bf16 input rounding).
    ref_f32 = jnp.maximum(x_ref @ w1 + b1, 0.0) @ w2 + b2
    assert jnp.allclose(logits, ref_f32, atol=5e-2, rtol=5e-2)

    print("KERNEL_OK")
</pallas_src>

<mosaic_0001>
module attributes {stable_mosaic.version = 11 : i64} {
  func.func @_mlp_kernel(%arg0: i32, %arg1: memref<8x128xbf16, #tpu.memory_space<vmem>>, %arg2: memref<128x128xbf16, #tpu.memory_space<vmem>>, %arg3: memref<1x128xf32, #tpu.memory_space<vmem>>, %arg4: memref<128x128xbf16, #tpu.memory_space<vmem>>, %arg5: memref<1x128xf32, #tpu.memory_space<vmem>>, %arg6: memref<8x128xf32, #tpu.memory_space<vmem>>) attributes {dimension_semantics = [#tpu.dimension_semantics<parallel>], iteration_bounds = array<i64: 2>, scalar_prefetch = 0 : i64, scratch_operands = 0 : i64, tpu.core_type = #tpu.core_type<tc>, window_params = [{pipeline_mode = #tpu.pipeline_mode<synchronous>, transform_indices = @transform_0, window_bounds = array<i64: 8, 128>}, {pipeline_mode = #tpu.pipeline_mode<synchronous>, transform_indices = @transform_1, window_bounds = array<i64: 128, 128>}, {pipeline_mode = #tpu.pipeline_mode<synchronous>, transform_indices = @transform_2, window_bounds = array<i64: 1, 128>}, {transform_indices = @transform_3, window_bounds = array<i64: 128, 128>}, {transform_indices = @transform_4, window_bounds = array<i64: 1, 128>}, {transform_indices = @transform_5, window_bounds = array<i64: 8, 128>}]} {
    %c0 = arith.constant 0 : index
    %c0_0 = arith.constant 0 : index
    %0 = vector.load %arg1[%c0, %c0_0] : memref<8x128xbf16, #tpu.memory_space<vmem>>, vector<8x128xbf16>
    %c0_1 = arith.constant 0 : index
    %c0_2 = arith.constant 0 : index
    %1 = vector.load %arg2[%c0_1, %c0_2] : memref<128x128xbf16, #tpu.memory_space<vmem>>, vector<128x128xbf16>
    %cst = arith.constant dense<0.000000e+00> : vector<8x128xf32>
    %2 = tpu.matmul %0, %1, %cst {dimension_numbers = #tpu.dot_dimension_numbers<[1], [0], [0], [1], [0, 0, 1, 1], [], []>} : vector<8x128xbf16>, vector<128x128xbf16>, vector<8x128xf32> -> vector<8x128xf32>
    %c0_3 = arith.constant 0 : index
    %c0_4 = arith.constant 0 : index
    %3 = vector.load %arg3[%c0_3, %c0_4] : memref<1x128xf32, #tpu.memory_space<vmem>>, vector<1x128xf32>
    %4 = vector.broadcast %3 : vector<1x128xf32> to vector<8x128xf32>
    %5 = arith.addf %2, %4 : vector<8x128xf32>
    %cst_5 = arith.constant 0.000000e+00 : f32
    %6 = vector.broadcast %cst_5 : f32 to vector<8x128xf32>
    %7 = arith.maximumf %5, %6 : vector<8x128xf32>
    %8 = arith.truncf %7 : vector<8x128xf32> to vector<8x128xbf16>
    %c0_6 = arith.constant 0 : index
    %c0_7 = arith.constant 0 : index
    %9 = vector.load %arg4[%c0_6, %c0_7] : memref<128x128xbf16, #tpu.memory_space<vmem>>, vector<128x128xbf16>
    %cst_8 = arith.constant dense<0.000000e+00> : vector<8x128xf32>
    %10 = tpu.matmul %8, %9, %cst_8 {dimension_numbers = #tpu.dot_dimension_numbers<[1], [0], [0], [1], [0, 0, 1, 1], [], []>} : vector<8x128xbf16>, vector<128x128xbf16>, vector<8x128xf32> -> vector<8x128xf32>
    %c0_9 = arith.constant 0 : index
    %c0_10 = arith.constant 0 : index
    %11 = vector.load %arg5[%c0_9, %c0_10] : memref<1x128xf32, #tpu.memory_space<vmem>>, vector<1x128xf32>
    %12 = vector.broadcast %11 : vector<1x128xf32> to vector<8x128xf32>
    %13 = arith.addf %10, %12 : vector<8x128xf32>
    %c0_11 = arith.constant 0 : index
    %c0_12 = arith.constant 0 : index
    %14 = vector.load %arg6[%c0_11, %c0_12] : memref<8x128xf32, #tpu.memory_space<vmem>>, vector<8x128xf32>
    tpu.vector_store %arg6[%c0_11, %c0_12], %13 {strides = array<i32>} : memref<8x128xf32, #tpu.memory_space<vmem>>, vector<8x128xf32>,
    return
  }
  func.func @transform_0(%arg0: i32) -> (i32, i32) {
    %c0_i32 = arith.constant 0 : i32
    %c0_i32_0 = arith.constant 0 : i32
    %c0_i32_1 = arith.constant 0 : i32
    return %c0_i32, %c0_i32_0 : i32, i32
  }
  func.func @transform_1(%arg0: i32) -> (i32, i32) {
    %c0_i32 = arith.constant 0 : i32
    %c0_i32_0 = arith.constant 0 : i32
    %c0_i32_1 = arith.constant 0 : i32
    return %c0_i32, %c0_i32_0 : i32, i32
  }
  func.func @transform_2(%arg0: i32) -> (i32, i32) {
    %c0_i32 = arith.constant 0 : i32
    %c0_i32_0 = arith.constant 0 : i32
    %c0_i32_1 = arith.constant 0 : i32
    return %c0_i32, %c0_i32_0 : i32, i32
  }
  func.func @transform_3(%arg0: i32) -> (i32, i32) {
    %c0_i32 = arith.constant 0 : i32
    %c0_i32_0 = arith.constant 0 : i32
    return %c0_i32, %arg0 : i32, i32
  }
  func.func @transform_4(%arg0: i32) -> (i32, i32) {
    %c0_i32 = arith.constant 0 : i32
    %c0_i32_0 = arith.constant 0 : i32
    return %c0_i32, %arg0 : i32, i32
  }
  func.func @transform_5(%arg0: i32) -> (i32, i32) {
    %c0_i32 = arith.constant 0 : i32
    %c0_i32_0 = arith.constant 0 : i32
    return %c0_i32, %arg0 : i32, i32
  }
}

module attributes {stable_mosaic.version = 11 : i64} {
  func.func @_mlp_kernel(%arg0: i32, %arg1: memref<8x128xbf16, #tpu.memory_space<vmem>>, %arg2: memref<128x128xbf16, #tpu.memory_space<vmem>>, %arg3: memref<1x128xf32, #tpu.memory_space<vmem>>, %arg4: memref<128x128xbf16, #tpu.memory_space<vmem>>, %arg5: memref<1x128xf32, #tpu.memory_space<vmem>>, %arg6: memref<8x128xf32, #tpu.memory_space<vmem>>) attributes {dimension_semantics = [#tpu.dimension_semantics<parallel>], iteration_bounds = array<i64: 2>, scalar_prefetch = 0 : i64, scratch_operands = 0 : i64, tpu.core_type = #tpu.core_type<tc>, window_params = [{pipeline_mode = #tpu.pipeline_mode<synchronous>, transform_indices = @transform_0, window_bounds = array<i64: 8, 128>}, {pipeline_mode = #tpu.pipeline_mode<synchronous>, transform_indices = @transform_1, window_bounds = array<i64: 128, 128>}, {pipeline_mode = #tpu.pipeline_mode<synchronous>, transform_indices = @transform_2, window_bounds = array<i64: 1, 128>}, {transform_indices = @transform_3, window_bounds = array<i64: 128, 128>}, {transform_indices = @transform_4, window_bounds = array<i64: 1, 128>}, {transform_indices = @transform_5, window_bounds = array<i64: 8, 128>}]} {
    %c0 = arith.constant 0 : index
    %c0_0 = arith.constant 0 : index
    %0 = vector.load %arg1[%c0, %c0_0] : memref<8x128xbf16, #tpu.memory_space<vmem>>, vector<8x128xbf16>
    %c0_1 = arith.constant 0 : index
    %c0_2 = arith.constant 0 : index
    %1 = vector.load %arg2[%c0_1, %c0_2] : memref<128x128xbf16, #tpu.memory_space<vmem>>, vector<128x128xbf16>
    %cst = arith.constant dense<0.000000e+00> : vector<8x128xf32>
    %2 = tpu.matmul %0, %1, %cst {dimension_numbers = #tpu.dot_dimension_numbers<[1], [0], [0], [1], [0, 0, 1, 1], [], []>} : vector<8x128xbf16>, vector<128x128xbf16>, vector<8x128xf32> -> vector<8x128xf32>
    %c0_3 = arith.constant 0 : index
    %c0_4 = arith.constant 0 : index
    %3 = vector.load %arg3[%c0_3, %c0_4] : memref<1x128xf32, #tpu.memory_space<vmem>>, vector<1x128xf32>
    %4 = vector.broadcast %3 : vector<1x128xf32> to vector<8x128xf32>
    %5 = arith.addf %2, %4 : vector<8x128xf32>
    %cst_5 = arith.constant 0.000000e+00 : f32
    %6 = vector.broadcast %cst_5 : f32 to vector<8x128xf32>
    %7 = arith.maximumf %5, %6 : vector<8x128xf32>
    %8 = arith.truncf %7 : vector<8x128xf32> to vector<8x128xbf16>
    %c0_6 = arith.constant 0 : index
    %c0_7 = arith.constant 0 : index
    %9 = vector.load %arg4[%c0_6, %c0_7] : memref<128x128xbf16, #tpu.memory_space<vmem>>, vector<128x128xbf16>
    %cst_8 = arith.constant dense<0.000000e+00> : vector<8x128xf32>
    %10 = tpu.matmul %8, %9, %cst_8 {dimension_numbers = #tpu.dot_dimension_numbers<[1], [0], [0], [1], [0, 0, 1, 1], [], []>} : vector<8x128xbf16>, vector<128x128xbf16>, vector<8x128xf32> -> vector<8x128xf32>
    %c0_9 = arith.constant 0 : index
    %c0_10 = arith.constant 0 : index
    %11 = vector.load %arg5[%c0_9, %c0_10] : memref<1x128xf32, #tpu.memory_space<vmem>>, vector<1x128xf32>
    %12 = vector.broadcast %11 : vector<1x128xf32> to vector<8x128xf32>
    %13 = arith.addf %10, %12 : vector<8x128xf32>
    %c0_11 = arith.constant 0 : index
    %c0_12 = arith.constant 0 : index
    %14 = vector.load %arg6[%c0_11, %c0_12] : memref<8x128xf32, #tpu.memory_space<vmem>>, vector<8x128xf32>
    tpu.vector_store %arg6[%c0_11, %c0_12], %13 {strides = array<i32>} : memref<8x128xf32, #tpu.memory_space<vmem>>, vector<8x128xf32>,
    return
  }
  func.func @transform_0(%arg0: i32) -> (i32, i32) {
    %c0_i32 = arith.constant 0 : i32
    %c0_i32_0 = arith.constant 0 : i32
    %c0_i32_1 = arith.constant 0 : i32
    return %c0_i32, %c0_i32_0 : i32, i32
  }
  func.func @transform_1(%arg0: i32) -> (i32, i32) {
    %c0_i32 = arith.constant 0 : i32
    %c0_i32_0 = arith.constant 0 : i32
    %c0_i32_1 = arith.constant 0 : i32
    return %c0_i32, %c0_i32_0 : i32, i32
  }
  func.func @transform_2(%arg0: i32) -> (i32, i32) {
    %c0_i32 = arith.constant 0 : i32
    %c0_i32_0 = arith.constant 0 : i32
    %c0_i32_1 = arith.constant 0 : i32
    return %c0_i32, %c0_i32_0 : i32, i32
  }
  func.func @transform_3(%arg0: i32) -> (i32, i32) {
    %c0_i32 = arith.constant 0 : i32
    %c0_i32_0 = arith.constant 0 : i32
    return %c0_i32, %arg0 : i32, i32
  }
  func.func @transform_4(%arg0: i32) -> (i32, i32) {
    %c0_i32 = arith.constant 0 : i32
    %c0_i32_0 = arith.constant 0 : i32
    return %c0_i32, %arg0 : i32, i32
  }
  func.func @transform_5(%arg0: i32) -> (i32, i32) {
    %c0_i32 = arith.constant 0 : i32
    %c0_i32_0 = arith.constant 0 : i32
    return %c0_i32, %arg0 : i32, i32
  }
}

</mosaic_0001>

<llo_original>
// kernel: _forward.1
$region0: #{_forward.1}
  #allocation0 [shape = 'u32[]', space=smem, size = 0x4, offset = 0x4, fixed_abs, tag = 'smem constant byte address 0x4 - core index']
  #allocation1 [shape = 'u32[144,128]{1,0:T(1,128)}', space=vmem, size = 0x12000, scoped, tag = 'internal scratch']
  %s0 = inlined_call_operand.vmem [shape: bf16[8,128], index: 0, kind: input, shape index: {}]
  %s1 = inlined_call_operand.vmem [shape: bf16[128,128], index: 1, kind: input, shape index: {}]
  %s2 = inlined_call_operand.vmem [shape: f32[1,128], index: 2, kind: input, shape index: {}]
  %s3 = inlined_call_operand.vmem [shape: bf16[128,256], index: 3, kind: input, shape index: {}]
  %s4 = inlined_call_operand.vmem [shape: f32[1,256], index: 4, kind: input, shape index: {}]
  %s5 = inlined_call_operand.hbm [shape: f32[8,256], index: 5, kind: output, shape index: {}]
  %s6 = sld [smem:[#allocation0]]
  $region94: #{_forward.1} parent=0
    _
  %s8 = ssub.s32 1, %s6
  %s9 = scalar_select 0, %s8, %s6
  $region1: #{_forward.1} parent=0
    #allocation2 [shape = 'u8[65536]{0}', space=vmem, size = 0x10000, scoped, tag = 'input window, operand 3']
    #allocation3 [shape = 'u8[8192]{0}', space=vmem, size = 0x2000, scoped, tag = 'output window, operand 0']
    #allocation4 [shape = 's32[2]{0}', space=sflag, size = 0x8, scoped, tag = 'scoped memory for _forward.1']
    %10 = vsyncpa [#allocation4], 0
    %s11 = scalar_lea.sflag [#allocation4], 1
    %12 = vsyncpa %s11, 0
    loop: start=0, step=1, limit=4
    $region2: #{_forward.1} parent=1 // loop_pre_header
      _
    $region3: #{_forward.1} parent=1 // loop_header
      %s14 = sphi 0, %s18
      %p15 = scmp.ge.s32.totalorder %s14, 4
      %s22 = sphi 0, %s22
      %s24 = sphi 0, %s22
      %s25 = sphi 0, %s24
      %s39 = sphi 0, %s25
      %s43 = sphi 0, %s43
      %s45 = sphi 0, %s43
      %s46 = sphi 0, %s45
      %s60 = sphi 0, %s46
      %s64 = sphi 0, %s64
      %s66 = sphi 0, %s64
      %s67 = sphi 0, %s66
      %s81 = sphi 0, %s67
      %s87 = sphi 0, %s89
      %s90 = sphi 0, %s87
      %s91 = sphi 0, %s90
      %s107 = sphi 0, %s91
      %s113 = sphi 0, %s115
      %s116 = sphi 0, %s113
      %s117 = sphi 0, %s116
      %s133 = sphi 0, %s117
      %s139 = sphi 0, %s141
      %s142 = sphi 0, %s139
      %s143 = sphi 0, %s142
      %s159 = sphi 0, %s143
    $region4: #{_forward.1} parent=1 // loop_header_branch
      %17 = sbr.rel (%p15) target = $region8
    $region5: #{_forward.1} parent=1 // loop_body
      %s19 = ssub.s32 %s14, 1
      %s20 = ssub.s32 %s14, 2
      %s21 = sadd.s32 %s14, 1
      %s23 = sadd.s32 %s22, 1
      %p26 = scmp.eq.s32.totalorder %s14, 1
      %p27 = scmp.ne.s32.totalorder %s22, %s24
      %p28 = scmp.eq.s32.totalorder %s14, 0
      %p29 = por %p27, %p28
      %p30 = scmp.ne.s32.totalorder %s22, %s24
      %p31 = scmp.eq.s32.totalorder %s19, 1
      %p32 = por %p30, %p31
      %p33 = scmp.ne.s32.totalorder %s24, %s25
      %p34 = scmp.eq.s32.totalorder %s19, 0
      %p35 = por %p33, %p34
      %p36 = scmp.ne.s32.totalorder %s24, %s25
      %p37 = scmp.eq.s32.totalorder %s20, 1
      %p38 = por %p36, %p37
      %p40 = scmp.ne.s32.totalorder %s25, %s39
      %p41 = scmp.eq.s32.totalorder %s20, 0
      %p42 = por %p40, %p41
      %s44 = sadd.s32 %s43, 1
      %p47 = scmp.eq.s32.totalorder %s14, 1
      %p48 = scmp.ne.s32.totalorder %s43, %s45
      %p49 = scmp.eq.s32.totalorder %s14, 0
      %p50 = por %p48, %p49
      %p51 = scmp.ne.s32.totalorder %s43, %s45
      %p52 = scmp.eq.s32.totalorder %s19, 1
      %p53 = por %p51, %p52
      %p54 = scmp.ne.s32.totalorder %s45, %s46
      %p55 = scmp.eq.s32.totalorder %s19, 0
      %p56 = por %p54, %p55
      %p57 = scmp.ne.s32.totalorder %s45, %s46
      %p58 = scmp.eq.s32.totalorder %s20, 1
      %p59 = por %p57, %p58
      %p61 = scmp.ne.s32.totalorder %s46, %s60
      %p62 = scmp.eq.s32.totalorder %s20, 0
      %p63 = por %p61, %p62
      %s65 = sadd.s32 %s64, 1
      %p68 = scmp.eq.s32.totalorder %s14, 1
      %p69 = scmp.ne.s32.totalorder %s64, %s66
      %p70 = scmp.eq.s32.totalorder %s14, 0
      %p71 = por %p69, %p70
      %p72 = scmp.ne.s32.totalorder %s64, %s66
      %p73 = scmp.eq.s32.totalorder %s19, 1
      %p74 = por %p72, %p73
      %p75 = scmp.ne.s32.totalorder %s66, %s67
      %p76 = scmp.eq.s32.totalorder %s19, 0
      %p77 = por %p75, %p76
      %p78 = scmp.ne.s32.totalorder %s66, %s67
      %p79 = scmp.eq.s32.totalorder %s20, 1
      %p80 = por %p78, %p79
      %p82 = scmp.ne.s32.totalorder %s67, %s81
      %p83 = scmp.eq.s32.totalorder %s20, 0
      %p84 = por %p82, %p83
      %s85 = ssub.s32 %s14, %s21
      %p86 = scmp.eq.s32.totalorder %s85, 0
      %s88 = sadd.s32 %s87, 1
      %s89 = scalar_select %p86, %s87, %s88
      %p92 = pneg %p86
      %p93 = scmp.eq.s32.totalorder %s14, 1
      %p94 = por %p92, %p93
      %p95 = scmp.ne.s32.totalorder %s87, %s90
      %p96 = scmp.eq.s32.totalorder %s14, 0
      %p97 = por %p95, %p96
      %p98 = scmp.ne.s32.totalorder %s87, %s90
      %p99 = scmp.eq.s32.totalorder %s19, 1
      %p100 = por %p98, %p99
      %p101 = scmp.ne.s32.totalorder %s90, %s91
      %p102 = scmp.eq.s32.totalorder %s19, 0
      %p103 = por %p101, %p102
      %p104 = scmp.ne.s32.totalorder %s90, %s91
      %p105 = scmp.eq.s32.totalorder %s20, 1
      %p106 = por %p104, %p105
      %p108 = scmp.ne.s32.totalorder %s91, %s107
      %p109 = scmp.eq.s32.totalorder %s20, 0
      %p110 = por %p108, %p109
      %s111 = ssub.s32 %s14, %s21
      %p112 = scmp.eq.s32.totalorder %s111, 0
      %s114 = sadd.s32 %s113, 1
      %s115 = scalar_select %p112, %s113, %s114
      %p118 = pneg %p112
      %p119 = scmp.eq.s32.totalorder %s14, 1
      %p120 = por %p118, %p119
      %p121 = scmp.ne.s32.totalorder %s113, %s116
      %p122 = scmp.eq.s32.totalorder %s14, 0
      %p123 = por %p121, %p122
      %p124 = scmp.ne.s32.totalorder %s113, %s116
      %p125 = scmp.eq.s32.totalorder %s19, 1
      %p126 = por %p124, %p125
      %p127 = scmp.ne.s32.totalorder %s116, %s117
      %p128 = scmp.eq.s32.totalorder %s19, 0
      %p129 = por %p127, %p128
      %p130 = scmp.ne.s32.totalorder %s116, %s117
      %p131 = scmp.eq.s32.totalorder %s20, 1
      %p132 = por %p130, %p131
      %p134 = scmp.ne.s32.totalorder %s117, %s133
      %p135 = scmp.eq.s32.totalorder %s20, 0
      %p136 = por %p134, %p135
      %s137 = ssub.s32 %s14, %s21
      %p138 = scmp.eq.s32.totalorder %s137, 0
      %s140 = sadd.s32 %s139, 1
      %s141 = scalar_select %p138, %s139, %s140
      %p144 = pneg %p138
      %p145 = scmp.eq.s32.totalorder %s14, 1
      %p146 = por %p144, %p145
      %p147 = scmp.ne.s32.totalorder %s139, %s142
      %p148 = scmp.eq.s32.totalorder %s14, 0
      %p149 = por %p147, %p148
      %p150 = scmp.ne.s32.totalorder %s139, %s142
      %p151 = scmp.eq.s32.totalorder %s19, 1
      %p152 = por %p150, %p151
      %p153 = scmp.ne.s32.totalorder %s142, %s143
      %p154 = scmp.eq.s32.totalorder %s19, 0
      %p155 = por %p153, %p154
      %p156 = scmp.ne.s32.totalorder %s142, %s143
      %p157 = scmp.eq.s32.totalorder %s20, 1
      %p158 = por %p156, %p157
      %p160 = scmp.ne.s32.totalorder %s143, %s159
      %p161 = scmp.eq.s32.totalorder %s20, 0
      %p162 = por %p160, %p161
      %p163 = scmp.le.s32.totalorder 1, %s14
      %p164 = scmp.lt.s32.totalorder %s14, 3
      %p165 = pnand %p163, %p164
      %p166 = pneg %p165
      // Predicated region
      $region9: #{_forward.1} parent=5 // pred_check
        _
      $region10: #{_forward.1} parent=5 // pred_check_branch
        %168 = sbr.rel (%p165) target = $region12
      $region11: #{_forward.1} parent=5 // pred_region
        %s169 = ssub.s32 %s14, 1
        // Predicated region
        $region13: #{_forward.1} parent=11 // pred_check
          %p170 = pneg %p35
        $region14: #{_forward.1} parent=11 // pred_check_branch
          %172 = sbr.rel (%p170) target = $region16
        $region15: #{_forward.1} parent=11 // pred_region
          _
        $region16: #{_forward.1} parent=11 // pred_fallthru
          _
        // Predicated region
        $region17: #{_forward.1} parent=11 // pred_check
          %p173 = pneg %p56
        $region18: #{_forward.1} parent=11 // pred_check_branch
          %175 = sbr.rel (%p173) target = $region20
        $region19: #{_forward.1} parent=11 // pred_region
          _
        $region20: #{_forward.1} parent=11 // pred_fallthru
          _
        // Predicated region
        $region21: #{_forward.1} parent=11 // pred_check
          %p176 = pneg %p77
        $region22: #{_forward.1} parent=11 // pred_check_branch
          %178 = sbr.rel (%p176) target = $region24
        $region23: #{_forward.1} parent=11 // pred_region
          _
        $region24: #{_forward.1} parent=11 // pred_fallthru
          _
      $region12: #{_forward.1} parent=5 // pred_fallthru
        _
      %p179 = scmp.lt.s32.totalorder %s14, 2
      // Predicated region
      $region25: #{_forward.1} parent=5 // pred_check
        %p180 = pneg %p179
      $region26: #{_forward.1} parent=5 // pred_check_branch
        %182 = sbr.rel (%p180) target = $region28
      $region27: #{_forward.1} parent=5 // pred_region
        // Predicated region
        $region29: #{_forward.1} parent=27 // pred_check
          %p183 = pneg %p97
        $region30: #{_forward.1} parent=27 // pred_check_branch
          %185 = sbr.rel (%p183) target = $region32
        $region31: #{_forward.1} parent=27 // pred_region
          %s186 = sand.u32 %s87, 1
          %s187 = sand.u32 %s87, 1
          %s188 = smul.addr %s187, 64
          %s189 = scalar_lea.vmem [#allocation2], %s188
          %s190 = smul.addr %s14, 4
          %s191 = scalar_lea.vmem %s3, %s190
          // Predicated region
          $region33: #{_forward.1} parent=31 // pred_check
            _
          $region34: #{_forward.1} parent=31 // pred_check_branch
            %193 = sbr.rel (0) target = $region36
          $region35: #{_forward.1} parent=31 // pred_region
            // Predicated region
            $region37: #{_forward.1} parent=35 // pred_check
              _
            $region38: #{_forward.1} parent=35 // pred_check_branch
              %195 = sbr.rel target = $region40
            $region39: #{_forward.1} parent=35 // pred_region
              // Predicated region
              $region52: #{_forward.1} parent=39 // pred_check
                _
              $region53: #{_forward.1} parent=39 // pred_check_branch
                %240 = sbr.rel (0) target = $region55
              $region54: #{_forward.1} parent=39 // pred_region
                loop: start=0, step=1, limit=1
                $region56: #{_forward.1} parent=54 // loop_pre_header
                  _
                $region57: #{_forward.1} parent=54 // loop_header
                  %s242 = sphi 0, %s246
                  %p243 = scmp.ge.s32.totalorder %s242, 1
                  %s247 = sphi %s191, %s191
                  %s248 = sphi %s189, %s189
                $region58: #{_forward.1} parent=54 // loop_header_branch
                  %245 = sbr.rel (%p243) target = $region62
                $region59: #{_forward.1} parent=54 // loop_body
                  _
                $region60: #{_forward.1} parent=54 // loop_footer
                  %s246 = sadd.s32 1, %s242
                $region61: #{_forward.1} parent=54 // loop_footer_branch
                  %241 = sbr.rel target = $region57
                $region62: #{_forward.1} parent=54 // loop_exit
                  _
                loop: start=0, step=1, limit=1
                $region63: #{_forward.1} parent=54 // loop_pre_header
                  _
                $region64: #{_forward.1} parent=54 // loop_header
                  %s251 = sphi 0, %s255
                  %p252 = scmp.ge.s32.totalorder %s251, 1
                  %s256 = sphi %s191, %s191
                  %s257 = sphi %s189, %s189
                $region65: #{_forward.1} parent=54 // loop_header_branch
                  %254 = sbr.rel (%p252) target = $region69
                $region66: #{_forward.1} parent=54 // loop_body
                  %v258 = vld [vmem:[%s256] sm:$0xf]
                  %259 = vst [vmem:[%s257] sm:$0xf] %v258
                  %v260 = vld [vmem:[%s256 + $0x8] sm:$0xf]
                  %261 = vst [vmem:[%s257 + $0x4] sm:$0xf] %v260
                  %v262 = vld [vmem:[%s256 + $0x10] sm:$0xf]
                  %263 = vst [vmem:[%s257 + $0x8] sm:$0xf] %v262
                  %v264 = vld [vmem:[%s256 + $0x18] sm:$0xf]
                  %265 = vst [vmem:[%s257 + $0xc] sm:$0xf] %v264
                  %v266 = vld [vmem:[%s256 + $0x20] sm:$0xf]
                  %267 = vst [vmem:[%s257 + $0x10] sm:$0xf] %v266
                  %v268 = vld [vmem:[%s256 + $0x28] sm:$0xf]
                  %269 = vst [vmem:[%s257 + $0x14] sm:$0xf] %v268
                  %v270 = vld [vmem:[%s256 + $0x30] sm:$0xf]
                  %271 = vst [vmem:[%s257 + $0x18] sm:$0xf] %v270
                  %v272 = vld [vmem:[%s256 + $0x38] sm:$0xf]
                  %273 = vst [vmem:[%s257 + $0x1c] sm:$0xf] %v272
                  %v274 = vld [vmem:[%s256 + $0x40] sm:$0xf]
                  %275 = vst [vmem:[%s257 + $0x20] sm:$0xf] %v274
                  %v276 = vld [vmem:[%s256 + $0x48] sm:$0xf]
                  %277 = vst [vmem:[%s257 + $0x24] sm:$0xf] %v276
                  %v278 = vld [vmem:[%s256 + $0x50] sm:$0xf]
                  %279 = vst [vmem:[%s257 + $0x28] sm:$0xf] %v278
                  %v280 = vld [vmem:[%s256 + $0x58] sm:$0xf]
                  %281 = vst [vmem:[%s257 + $0x2c] sm:$0xf] %v280
                  %v282 = vld [vmem:[%s256 + $0x60] sm:$0xf]
                  %283 = vst [vmem:[%s257 + $0x30] sm:$0xf] %v282
                  %v284 = vld [vmem:[%s256 + $0x68] sm:$0xf]
                  %285 = vst [vmem:[%s257 + $0x34] sm:$0xf] %v284
                  %v286 = vld [vmem:[%s256 + $0x70] sm:$0xf]
                  %287 = vst [vmem:[%s257 + $0x38] sm:$0xf] %v286
                  %v288 = vld [vmem:[%s256 + $0x78] sm:$0xf]
                  %289 = vst [vmem:[%s257 + $0x3c] sm:$0xf] %v288
                $region67: #{_forward.1} parent=54 // loop_footer
                  %s255 = sadd.s32 1, %s251
                $region68: #{_forward.1} parent=54 // loop_footer_branch
                  %250 = sbr.rel target = $region64
                $region69: #{_forward.1} parent=54 // loop_exit
                  _
              $region55: #{_forward.1} parent=39 // pred_fallthru
                _
            $region40: #{_forward.1} parent=35 // pred_fallthru
              _
            // Predicated region
            $region41: #{_forward.1} parent=35 // pred_check
              _
            $region42: #{_forward.1} parent=35 // pred_check_branch
              %197 = sbr.rel (0) target = $region44
            $region43: #{_forward.1} parent=35 // pred_region
              loop: start=0, step=1, limit=1
              $region45: #{_forward.1} parent=43 // loop_pre_header
                _
              $region46: #{_forward.1} parent=43 // loop_header
                %s200 = sphi 0, %s204
                %p201 = scmp.ge.s32.totalorder %s200, 1
                %s205 = sphi %s191, %s191
                %s206 = sphi %s189, %s189
              $region47: #{_forward.1} parent=43 // loop_header_branch
                %203 = sbr.rel (%p201) target = $region51
              $region48: #{_forward.1} parent=43 // loop_body
                %v207 = vld [vmem:[%s205] sm:$0xf]
                %208 = vst [vmem:[%s206] sm:$0xf] %v207
                %v209 = vld [vmem:[%s205 + $0x8] sm:$0xf]
                %210 = vst [vmem:[%s206 + $0x4] sm:$0xf] %v209
                %v211 = vld [vmem:[%s205 + $0x10] sm:$0xf]
                %212 = vst [vmem:[%s206 + $0x8] sm:$0xf] %v211
                %v213 = vld [vmem:[%s205 + $0x18] sm:$0xf]
                %214 = vst [vmem:[%s206 + $0xc] sm:$0xf] %v213
                %v215 = vld [vmem:[%s205 + $0x20] sm:$0xf]
                %216 = vst [vmem:[%s206 + $0x10] sm:$0xf] %v215
                %v217 = vld [vmem:[%s205 + $0x28] sm:$0xf]
                %218 = vst [vmem:[%s206 + $0x14] sm:$0xf] %v217
                %v219 = vld [vmem:[%s205 + $0x30] sm:$0xf]
                %220 = vst [vmem:[%s206 + $0x18] sm:$0xf] %v219
                %v221 = vld [vmem:[%s205 + $0x38] sm:$0xf]
                %222 = vst [vmem:[%s206 + $0x1c] sm:$0xf] %v221
                %v223 = vld [vmem:[%s205 + $0x40] sm:$0xf]
                %224 = vst [vmem:[%s206 + $0x20] sm:$0xf] %v223
                %v225 = vld [vmem:[%s205 + $0x48] sm:$0xf]
                %226 = vst [vmem:[%s206 + $0x24] sm:$0xf] %v225
                %v227 = vld [vmem:[%s205 + $0x50] sm:$0xf]
                %228 = vst [vmem:[%s206 + $0x28] sm:$0xf] %v227
                %v229 = vld [vmem:[%s205 + $0x58] sm:$0xf]
                %230 = vst [vmem:[%s206 + $0x2c] sm:$0xf] %v229
                %v231 = vld [vmem:[%s205 + $0x60] sm:$0xf]
                %232 = vst [vmem:[%s206 + $0x30] sm:$0xf] %v231
                %v233 = vld [vmem:[%s205 + $0x68] sm:$0xf]
                %234 = vst [vmem:[%s206 + $0x34] sm:$0xf] %v233
                %v235 = vld [vmem:[%s205 + $0x70] sm:$0xf]
                %236 = vst [vmem:[%s206 + $0x38] sm:$0xf] %v235
                %v237 = vld [vmem:[%s205 + $0x78] sm:$0xf]
                %238 = vst [vmem:[%s206 + $0x3c] sm:$0xf] %v237
              $region49: #{_forward.1} parent=43 // loop_footer
                %s204 = sadd.s32 1, %s200
              $region50: #{_forward.1} parent=43 // loop_footer_branch
                %199 = sbr.rel target = $region46
              $region51: #{_forward.1} parent=43 // loop_exit
                _
            $region44: #{_forward.1} parent=35 // pred_fallthru
              _
          $region36: #{_forward.1} parent=31 // pred_fallthru
            _
          %290 = vnop
        $region32: #{_forward.1} parent=27 // pred_fallthru
          _
        // Predicated region
        $region70: #{_forward.1} parent=27 // pred_check
          %p291 = pneg %p123
        $region71: #{_forward.1} parent=27 // pred_check_branch
          %293 = sbr.rel (%p291) target = $region73
        $region72: #{_forward.1} parent=27 // pred_region
          %p294 = scmp.lt.s32.totalorder %s14, 1
          %s295 = scalar_select %p294, %s14, 1
          %s296 = scalar_lea.vmem %s4, %s295
        $region73: #{_forward.1} parent=27 // pred_fallthru
          _
      $region28: #{_forward.1} parent=5 // pred_fallthru
        _
      %p297 = scmp.le.s32.totalorder 1, %s14
      %p298 = scmp.lt.s32.totalorder %s14, 3
      %p299 = pnand %p297, %p298
      %p300 = pneg %p299
      // Predicated region
      $region74: #{_forward.1} parent=5 // pred_check
        _
      $region75: #{_forward.1} parent=5 // pred_check_branch
        %302 = sbr.rel (%p299) target = $region77
      $region76: #{_forward.1} parent=5 // pred_region
        %s303 = ssub.s32 %s14, 1
        %s304 = sand.u32 %s90, 1
        %s305 = sand.u32 %s90, 1
        %s306 = smul.addr %s305, 64
        %s307 = scalar_lea.vmem [#allocation2], %s306
        // Predicated region
        $region78: #{_forward.1} parent=76 // pred_check
          %p308 = pneg %p103
        $region79: #{_forward.1} parent=76 // pred_check_branch
          %310 = sbr.rel (%p308) target = $region81
        $region80: #{_forward.1} parent=76 // pred_region
          _
        $region81: #{_forward.1} parent=76 // pred_fallthru
          _
        %p311 = pneg %p35
        %p312 = pneg %p32
        %p313 = pneg %p56
        %p314 = pneg %p53
        %p315 = pneg %p77
        %p316 = pneg %p74
        %s317 = sand.u32 %s90, 1
        %s318 = sand.u32 %s90, 1
        %s319 = smul.addr %s318, 64
        %s320 = scalar_lea.vmem [#allocation2], %s319
        %p321 = pneg %p103
        %p322 = pneg %p100
        %p323 = scmp.lt.s32.totalorder %s19, 1
        %s324 = scalar_select %p323, %s19, 1
        %s325 = scalar_lea.vmem %s4, %s324
        %p326 = pneg %p129
        %p327 = pneg %p126
        %p328 = pneg %p155
        %p329 = pneg %p152
        %s330 = sand.u32 %s142, 1
        %s331 = scalar_lea.sflag [#allocation4], %s330
        %s332 = sand.u32 %s142, 1
        %s333 = smul.addr %s332, 8
        %s334 = scalar_lea.vmem [#allocation3], %s333
        %p335 = scmp.lt.s32.totalorder %s19, 1
        %s336 = scalar_select %p335, %s19, 1
        %s337 = scalar_lea.vmem %s4, %s336
        %v339 = vld [vmem:[%s0] sm:$0xf]
        %v340 = vld [vmem:[%s1] sm:$0xf]
        %v341 = vld [vmem:[%s1 + $0x4] sm:$0xf]
        %v342 = vld [vmem:[%s1 + $0x8] sm:$0xf]
        %v343 = vld [vmem:[%s1 + $0xc] sm:$0xf]
        %v344 = vld [vmem:[%s1 + $0x10] sm:$0xf]
        %v345 = vld [vmem:[%s1 + $0x14] sm:$0xf]
        %v346 = vld [vmem:[%s1 + $0x18] sm:$0xf]
        %v347 = vld [vmem:[%s1 + $0x1c] sm:$0xf]
        %v348 = vld [vmem:[%s1 + $0x20] sm:$0xf]
        %v349 = vld [vmem:[%s1 + $0x24] sm:$0xf]
        %v350 = vld [vmem:[%s1 + $0x28] sm:$0xf]
        %v351 = vld [vmem:[%s1 + $0x2c] sm:$0xf]
        %v352 = vld [vmem:[%s1 + $0x30] sm:$0xf]
        %v353 = vld [vmem:[%s1 + $0x34] sm:$0xf]
        %v354 = vld [vmem:[%s1 + $0x38] sm:$0xf]
        %v355 = vld [vmem:[%s1 + $0x3c] sm:$0xf]
        %v356 = vld [vmem:[%s2] sm:$0x1]
        %v358 = vlaneseq
        %v359 = vshrl.u32 %v358, 7
        %v360 = vsub.s32 0, %v359
        %v361 = vrot.slane %v356, %v360
        %v379 = vunpack.c.l.b16 %v340
        %v380 = vunpack.c.l.b16 %v341
        %v381 = vunpack.c.l.b16 %v342
        %v382 = vunpack.c.l.b16 %v343
        %v383 = vunpack.c.l.b16 %v344
        %v384 = vunpack.c.l.b16 %v345
        %v385 = vunpack.c.l.b16 %v346
        %v386 = vunpack.c.l.b16 %v347
        %v387 = vunpack.c.l.b16 %v348
        %v388 = vunpack.c.l.b16 %v349
        %v389 = vunpack.c.l.b16 %v350
        %v390 = vunpack.c.l.b16 %v351
        %v391 = vunpack.c.l.b16 %v352
        %v392 = vunpack.c.l.b16 %v353
        %v393 = vunpack.c.l.b16 %v354
        %v394 = vunpack.c.l.b16 %v355
        %v395 = vpack.c.b16 %v380, %v379
        %v396 = vpack.c.b16 %v382, %v381
        %v397 = vpack.c.b16 %v384, %v383
        %v398 = vpack.c.b16 %v386, %v385
        %v399 = vpack.c.b16 %v388, %v387
        %v400 = vpack.c.b16 %v390, %v389
        %v401 = vpack.c.b16 %v392, %v391
        %v402 = vpack.c.b16 %v394, %v393
        %411 = vmatprep.subr.bf16.mxu0 0
        %412 = vmatpush1.bf16.msra.mxu0 %v395
        %413 = vmatprep.subr.bf16.mxu0 0
        %414 = vmatpush1.bf16.msra.mxu0 %v396
        %415 = vmatprep.subr.bf16.mxu0 0
        %416 = vmatpush1.bf16.msra.mxu0 %v397
        %417 = vmatprep.subr.bf16.mxu0 0
        %418 = vmatpush1.bf16.msra.mxu0 %v398
        %419 = vmatprep.subr.bf16.mxu0 0
        %420 = vmatpush1.bf16.msra.mxu0 %v399
        %421 = vmatprep.subr.bf16.mxu0 0
        %422 = vmatpush1.bf16.msra.mxu0 %v400
        %423 = vmatprep.subr.bf16.mxu0 0
        %424 = vmatpush1.bf16.msra.mxu0 %v401
        %425 = vmatprep.subr.bf16.mxu0 0
        %426 = vmatpush1.bf16.msra.mxu0 %v402
        %427 = vmatprep.subr.bf16.mxu0 0
        %428 = vmatpush1.bf16.msra.mxu0 0
        %429 = vmatprep.subr.bf16.mxu0 0
        %430 = vmatpush1.bf16.msra.mxu0 0
        %431 = vmatprep.subr.bf16.mxu0 0
        %432 = vmatpush1.bf16.msra.mxu0 0
        %433 = vmatprep.subr.bf16.mxu0 0
        %434 = vmatpush1.bf16.msra.mxu0 0
        %435 = vmatprep.subr.bf16.mxu0 0
        %436 = vmatpush1.bf16.msra.mxu0 0
        %437 = vmatprep.subr.bf16.mxu0 0
        %438 = vmatpush1.bf16.msra.mxu0 0
        %439 = vmatprep.subr.bf16.mxu0 0
        %440 = vmatpush1.bf16.msra.mxu0 0
        %441 = vmatprep.subr.bf16.mxu0 0
        %442 = vmatpush1.bf16.msra.mxu0 0
        %443 = vmatprep.mubr.bf16.mxu0 0
        %444 = vmatmul.mubr.bf16.gmra.mrb[0].mxu0 %v339
        %v445 = vpop.f32.mrb[0].mxu0
        %v446 = vadd.f32 %v361, %v445
        %v447 = vpop.f32.mrb[0].mxu0
        %v448 = vpop.f32.mrb[0].mxu0
        %v449 = vpop.f32.mrb[0].mxu0
        %450 = vdwg.mxu0
        %v451 = vmax.f32 %v446, 0.0
        %v452 = vpack.c.bf16 %v451, %v451
        %v453 = vld [vmem:[%s307] sm:$0xf]
        %v454 = vld [vmem:[%s307 + $0x4] sm:$0xf]
        %v455 = vld [vmem:[%s307 + $0x8] sm:$0xf]
        %v456 = vld [vmem:[%s307 + $0xc] sm:$0xf]
        %v457 = vld [vmem:[%s307 + $0x10] sm:$0xf]
        %v458 = vld [vmem:[%s307 + $0x14] sm:$0xf]
        %v459 = vld [vmem:[%s307 + $0x18] sm:$0xf]
        %v460 = vld [vmem:[%s307 + $0x1c] sm:$0xf]
        %v461 = vld [vmem:[%s307 + $0x20] sm:$0xf]
        %v462 = vld [vmem:[%s307 + $0x24] sm:$0xf]
        %v463 = vld [vmem:[%s307 + $0x28] sm:$0xf]
        %v464 = vld [vmem:[%s307 + $0x2c] sm:$0xf]
        %v465 = vld [vmem:[%s307 + $0x30] sm:$0xf]
        %v466 = vld [vmem:[%s307 + $0x34] sm:$0xf]
        %v467 = vld [vmem:[%s307 + $0x38] sm:$0xf]
        %v468 = vld [vmem:[%s307 + $0x3c] sm:$0xf]
        %v469 = vld [vmem:[%s337] sm:$0x1]
        %v471 = vlaneseq
        %v472 = vshrl.u32 %v471, 7
        %v473 = vsub.s32 0, %v472
        %v474 = vrot.slane %v469, %v473
        %v492 = vunpack.c.l.b16 %v453
        %v493 = vunpack.c.l.b16 %v454
        %v494 = vunpack.c.l.b16 %v455
        %v495 = vunpack.c.l.b16 %v456
        %v496 = vunpack.c.l.b16 %v457
        %v497 = vunpack.c.l.b16 %v458
        %v498 = vunpack.c.l.b16 %v459
        %v499 = vunpack.c.l.b16 %v460
        %v500 = vunpack.c.l.b16 %v461
        %v501 = vunpack.c.l.b16 %v462
        %v502 = vunpack.c.l.b16 %v463
        %v503 = vunpack.c.l.b16 %v464
        %v504 = vunpack.c.l.b16 %v465
        %v505 = vunpack.c.l.b16 %v466
        %v506 = vunpack.c.l.b16 %v467
        %v507 = vunpack.c.l.b16 %v468
        %v508 = vpack.c.b16 %v493, %v492
        %v509 = vpack.c.b16 %v495, %v494
        %v510 = vpack.c.b16 %v497, %v496
        %v511 = vpack.c.b16 %v499, %v498
        %v512 = vpack.c.b16 %v501, %v500
        %v513 = vpack.c.b16 %v503, %v502
        %v514 = vpack.c.b16 %v505, %v504
        %v515 = vpack.c.b16 %v507, %v506
        %524 = vmatprep.subr.bf16.mxu0 0
        %525 = vmatpush1.bf16.msra.mxu0 %v508
        %526 = vmatprep.subr.bf16.mxu0 0
        %527 = vmatpush1.bf16.msra.mxu0 %v509
        %528 = vmatprep.subr.bf16.mxu0 0
        %529 = vmatpush1.bf16.msra.mxu0 %v510
        %530 = vmatprep.subr.bf16.mxu0 0
        %531 = vmatpush1.bf16.msra.mxu0 %v511
        %532 = vmatprep.subr.bf16.mxu0 0
        %533 = vmatpush1.bf16.msra.mxu0 %v512
        %534 = vmatprep.subr.bf16.mxu0 0
        %535 = vmatpush1.bf16.msra.mxu0 %v513
        %536 = vmatprep.subr.bf16.mxu0 0
        %537 = vmatpush1.bf16.msra.mxu0 %v514
        %538 = vmatprep.subr.bf16.mxu0 0
        %539 = vmatpush1.bf16.msra.mxu0 %v515
        %540 = vmatprep.subr.bf16.mxu0 0
        %541 = vmatpush1.bf16.msra.mxu0 0
        %542 = vmatprep.subr.bf16.mxu0 0
        %543 = vmatpush1.bf16.msra.mxu0 0
        %544 = vmatprep.subr.bf16.mxu0 0
        %545 = vmatpush1.bf16.msra.mxu0 0
        %546 = vmatprep.subr.bf16.mxu0 0
        %547 = vmatpush1.bf16.msra.mxu0 0
        %548 = vmatprep.subr.bf16.mxu0 0
        %549 = vmatpush1.bf16.msra.mxu0 0
        %550 = vmatprep.subr.bf16.mxu0 0
        %551 = vmatpush1.bf16.msra.mxu0 0
        %552 = vmatprep.subr.bf16.mxu0 0
        %553 = vmatpush1.bf16.msra.mxu0 0
        %554 = vmatprep.subr.bf16.mxu0 0
        %555 = vmatpush1.bf16.msra.mxu0 0
        %556 = vmatprep.mubr.bf16.mxu0 0
        %557 = vmatmul.mubr.bf16.gmra.mrb[0].mxu0 %v452
        %v558 = vpop.f32.mrb[0].mxu0
        %v559 = vadd.f32 %v474, %v558
        %v560 = vpop.f32.mrb[0].mxu0
        %v561 = vpop.f32.mrb[0].mxu0
        %v562 = vpop.f32.mrb[0].mxu0
        %563 = vdwg.mxu0
        %564 = vst [vmem:[%s334] sm:$0xff] %v559
        %s565 = sand.u32 %s142, 1
        %s566 = scalar_lea.sflag [#allocation4], %s565
        %s567 = sand.u32 %s142, 1
        %s568 = smul.addr %s567, 8
        %s569 = scalar_lea.vmem [#allocation3], %s568
        // Predicated region
        $region82: #{_forward.1} parent=76 // pred_check
          %p570 = pneg %p152
        $region83: #{_forward.1} parent=76 // pred_check_branch
          %572 = sbr.rel (%p570) target = $region85
        $region84: #{_forward.1} parent=76 // pred_region
          %s574 = ssub.s32 128, 128
          %575 = vsyncadd %s566, %s574
          %s576 = smul.addr %s19, 128
          %s577 = scalar_lea.hbm %s5, %s576
          %s579 = sshll.u32 %s569, 4
          %s580 = int_to_ptr.vmem [resolvable:$true] %s579
          %582 = dma.vmem_to_hbm [thread:$0]  %s580, 128, %s577, %s566
        $region85: #{_forward.1} parent=76 // pred_fallthru
          _
      $region77: #{_forward.1} parent=5 // pred_fallthru
        _
      %p583 = scmp.le.s32.totalorder 2, %s14
      // Predicated region
      $region86: #{_forward.1} parent=5 // pred_check
        %p584 = pneg %p583
      $region87: #{_forward.1} parent=5 // pred_check_branch
        %586 = sbr.rel (%p584) target = $region89
      $region88: #{_forward.1} parent=5 // pred_region
        %s587 = ssub.s32 %s14, 2
        // Predicated region
        $region90: #{_forward.1} parent=88 // pred_check
          %p588 = pneg %p158
        $region91: #{_forward.1} parent=88 // pred_check_branch
          %590 = sbr.rel (%p588) target = $region93
        $region92: #{_forward.1} parent=88 // pred_region
          %s591 = sand.u32 %s143, 1
          %s592 = scalar_lea.sflag [#allocation4], %s591
          %s593 = sand.u32 %s143, 1
          %s594 = smul.addr %s593, 8
          %s595 = scalar_lea.vmem [#allocation3], %s594
          %596 = dma.done %s592, 128
        $region93: #{_forward.1} parent=88 // pred_fallthru
          _
      $region89: #{_forward.1} parent=5 // pred_fallthru
        _
    $region6: #{_forward.1} parent=1 // loop_footer
      %s18 = sadd.s32 1, %s14
    $region7: #{_forward.1} parent=1 // loop_footer_branch
      %13 = sbr.rel target = $region3
    $region8: #{_forward.1} parent=1 // loop_exit
      _
    %597 = vsyncpa [#allocation4], 1
    %s598 = scalar_lea.sflag [#allocation4], 1
    %599 = vsyncpa %s598, 1

// kernel: _forward.1
$region0: #{_forward.1}
  #allocation0 [shape = 'u32[]', space=smem, size = 0x4, offset = 0x4, fixed_abs, tag = 'smem constant byte address 0x4 - core index']
  #allocation1 [shape = 'u32[144,128]{1,0:T(1,128)}', space=vmem, size = 0x12000, scoped, tag = 'internal scratch']
  %s0 = inlined_call_operand.vmem [shape: bf16[8,128], index: 0, kind: input, shape index: {}]
  %s1 = inlined_call_operand.vmem [shape: bf16[128,128], index: 1, kind: input, shape index: {}]
  %s2 = inlined_call_operand.vmem [shape: f32[1,128], index: 2, kind: input, shape index: {}]
  %s3 = inlined_call_operand.vmem [shape: bf16[128,256], index: 3, kind: input, shape index: {}]
  %s4 = inlined_call_operand.vmem [shape: f32[1,256], index: 4, kind: input, shape index: {}]
  %s5 = inlined_call_operand.hbm [shape: f32[8,256], index: 5, kind: output, shape index: {}]
  %s6 = sld [smem:[#allocation0]]
  $region94: #{_forward.1} parent=0
    _
  %s8 = ssub.s32 1, %s6
  %s9 = scalar_select 0, %s8, %s6
  $region1: #{_forward.1} parent=0
    #allocation2 [shape = 'u8[65536]{0}', space=vmem, size = 0x10000, scoped, tag = 'input window, operand 3']
    #allocation3 [shape = 'u8[8192]{0}', space=vmem, size = 0x2000, scoped, tag = 'output window, operand 0']
    #allocation4 [shape = 's32[2]{0}', space=sflag, size = 0x8, scoped, tag = 'scoped memory for _forward.1']
    %10 = vsyncpa [#allocation4], 0
    %s11 = scalar_lea.sflag [#allocation4], 1
    %12 = vsyncpa %s11, 0
    loop: start=0, step=1, limit=4
    $region2: #{_forward.1} parent=1 // loop_pre_header
      _
    $region3: #{_forward.1} parent=1 // loop_header
      %s14 = sphi 0, %s18
      %p15 = scmp.ge.s32.totalorder %s14, 4
      %s22 = sphi 0, %s22
      %s24 = sphi 0, %s22
      %s25 = sphi 0, %s24
      %s39 = sphi 0, %s25
      %s43 = sphi 0, %s43
      %s45 = sphi 0, %s43
      %s46 = sphi 0, %s45
      %s60 = sphi 0, %s46
      %s64 = sphi 0, %s64
      %s66 = sphi 0, %s64
      %s67 = sphi 0, %s66
      %s81 = sphi 0, %s67
      %s87 = sphi 0, %s89
      %s90 = sphi 0, %s87
      %s91 = sphi 0, %s90
      %s107 = sphi 0, %s91
      %s113 = sphi 0, %s115
      %s116 = sphi 0, %s113
      %s117 = sphi 0, %s116
      %s133 = sphi 0, %s117
      %s139 = sphi 0, %s141
      %s142 = sphi 0, %s139
      %s143 = sphi 0, %s142
      %s159 = sphi 0, %s143
    $region4: #{_forward.1} parent=1 // loop_header_branch
      %17 = sbr.rel (%p15) target = $region8
    $region5: #{_forward.1} parent=1 // loop_body
      %s19 = ssub.s32 %s14, 1
      %s20 = ssub.s32 %s14, 2
      %s21 = sadd.s32 %s14, 1
      %s23 = sadd.s32 %s22, 1
      %p26 = scmp.eq.s32.totalorder %s14, 1
      %p27 = scmp.ne.s32.totalorder %s22, %s24
      %p28 = scmp.eq.s32.totalorder %s14, 0
      %p29 = por %p27, %p28
      %p30 = scmp.ne.s32.totalorder %s22, %s24
      %p31 = scmp.eq.s32.totalorder %s19, 1
      %p32 = por %p30, %p31
      %p33 = scmp.ne.s32.totalorder %s24, %s25
      %p34 = scmp.eq.s32.totalorder %s19, 0
      %p35 = por %p33, %p34
      %p36 = scmp.ne.s32.totalorder %s24, %s25
      %p37 = scmp.eq.s32.totalorder %s20, 1
      %p38 = por %p36, %p37
      %p40 = scmp.ne.s32.totalorder %s25, %s39
      %p41 = scmp.eq.s32.totalorder %s20, 0
      %p42 = por %p40, %p41
      %s44 = sadd.s32 %s43, 1
      %p47 = scmp.eq.s32.totalorder %s14, 1
      %p48 = scmp.ne.s32.totalorder %s43, %s45
      %p49 = scmp.eq.s32.totalorder %s14, 0
      %p50 = por %p48, %p49
      %p51 = scmp.ne.s32.totalorder %s43, %s45
      %p52 = scmp.eq.s32.totalorder %s19, 1
      %p53 = por %p51, %p52
      %p54 = scmp.ne.s32.totalorder %s45, %s46
      %p55 = scmp.eq.s32.totalorder %s19, 0
      %p56 = por %p54, %p55
      %p57 = scmp.ne.s32.totalorder %s45, %s46
      %p58 = scmp.eq.s32.totalorder %s20, 1
      %p59 = por %p57, %p58
      %p61 = scmp.ne.s32.totalorder %s46, %s60
      %p62 = scmp.eq.s32.totalorder %s20, 0
      %p63 = por %p61, %p62
      %s65 = sadd.s32 %s64, 1
      %p68 = scmp.eq.s32.totalorder %s14, 1
      %p69 = scmp.ne.s32.totalorder %s64, %s66
      %p70 = scmp.eq.s32.totalorder %s14, 0
      %p71 = por %p69, %p70
      %p72 = scmp.ne.s32.totalorder %s64, %s66
      %p73 = scmp.eq.s32.totalorder %s19, 1
      %p74 = por %p72, %p73
      %p75 = scmp.ne.s32.totalorder %s66, %s67
      %p76 = scmp.eq.s32.totalorder %s19, 0
      %p77 = por %p75, %p76
      %p78 = scmp.ne.s32.totalorder %s66, %s67
      %p79 = scmp.eq.s32.totalorder %s20, 1
      %p80 = por %p78, %p79
      %p82 = scmp.ne.s32.totalorder %s67, %s81
      %p83 = scmp.eq.s32.totalorder %s20, 0
      %p84 = por %p82, %p83
      %s85 = ssub.s32 %s14, %s21
      %p86 = scmp.eq.s32.totalorder %s85, 0
      %s88 = sadd.s32 %s87, 1
      %s89 = scalar_select %p86, %s87, %s88
      %p92 = pneg %p86
      %p93 = scmp.eq.s32.totalorder %s14, 1
      %p94 = por %p92, %p93
      %p95 = scmp.ne.s32.totalorder %s87, %s90
      %p96 = scmp.eq.s32.totalorder %s14, 0
      %p97 = por %p95, %p96
      %p98 = scmp.ne.s32.totalorder %s87, %s90
      %p99 = scmp.eq.s32.totalorder %s19, 1
      %p100 = por %p98, %p99
      %p101 = scmp.ne.s32.totalorder %s90, %s91
      %p102 = scmp.eq.s32.totalorder %s19, 0
      %p103 = por %p101, %p102
      %p104 = scmp.ne.s32.totalorder %s90, %s91
      %p105 = scmp.eq.s32.totalorder %s20, 1
      %p106 = por %p104, %p105
      %p108 = scmp.ne.s32.totalorder %s91, %s107
      %p109 = scmp.eq.s32.totalorder %s20, 0
      %p110 = por %p108, %p109
      %s111 = ssub.s32 %s14, %s21
      %p112 = scmp.eq.s32.totalorder %s111, 0
      %s114 = sadd.s32 %s113, 1
      %s115 = scalar_select %p112, %s113, %s114
      %p118 = pneg %p112
      %p119 = scmp.eq.s32.totalorder %s14, 1
      %p120 = por %p118, %p119
      %p121 = scmp.ne.s32.totalorder %s113, %s116
      %p122 = scmp.eq.s32.totalorder %s14, 0
      %p123 = por %p121, %p122
      %p124 = scmp.ne.s32.totalorder %s113, %s116
      %p125 = scmp.eq.s32.totalorder %s19, 1
      %p126 = por %p124, %p125
      %p127 = scmp.ne.s32.totalorder %s116, %s117
      %p128 = scmp.eq.s32.totalorder %s19, 0
      %p129 = por %p127, %p128
      %p130 = scmp.ne.s32.totalorder %s116, %s117
      %p131 = scmp.eq.s32.totalorder %s20, 1
      %p132 = por %p130, %p131
      %p134 = scmp.ne.s32.totalorder %s117, %s133
      %p135 = scmp.eq.s32.totalorder %s20, 0
      %p136 = por %p134, %p135
      %s137 = ssub.s32 %s14, %s21
      %p138 = scmp.eq.s32.totalorder %s137, 0
      %s140 = sadd.s32 %s139, 1
      %s141 = scalar_select %p138, %s139, %s140
      %p144 = pneg %p138
      %p145 = scmp.eq.s32.totalorder %s14, 1
      %p146 = por %p144, %p145
      %p147 = scmp.ne.s32.totalorder %s139, %s142
      %p148 = scmp.eq.s32.totalorder %s14, 0
      %p149 = por %p147, %p148
      %p150 = scmp.ne.s32.totalorder %s139, %s142
      %p151 = scmp.eq.s32.totalorder %s19, 1
      %p152 = por %p150, %p151
      %p153 = scmp.ne.s32.totalorder %s142, %s143
      %p154 = scmp.eq.s32.totalorder %s19, 0
      %p155 = por %p153, %p154
      %p156 = scmp.ne.s32.totalorder %s142, %s143
      %p157 = scmp.eq.s32.totalorder %s20, 1
      %p158 = por %p156, %p157
      %p160 = scmp.ne.s32.totalorder %s143, %s159
      %p161 = scmp.eq.s32.totalorder %s20, 0
      %p162 = por %p160, %p161
      %p163 = scmp.le.s32.totalorder 1, %s14
      %p164 = scmp.lt.s32.totalorder %s14, 3
      %p165 = pnand %p163, %p164
      %p166 = pneg %p165
      // Predicated region
      $region9: #{_forward.1} parent=5 // pred_check
        _
      $region10: #{_forward.1} parent=5 // pred_check_branch
        %168 = sbr.rel (%p165) target = $region12
      $region11: #{_forward.1} parent=5 // pred_region
        %s169 = ssub.s32 %s14, 1
        // Predicated region
        $region13: #{_forward.1} parent=11 // pred_check
          %p170 = pneg %p35
        $region14: #{_forward.1} parent=11 // pred_check_branch
          %172 = sbr.rel (%p170) target = $region16
        $region15: #{_forward.1} parent=11 // pred_region
          _
        $region16: #{_forward.1} parent=11 // pred_fallthru
          _
        // Predicated region
        $region17: #{_forward.1} parent=11 // pred_check
          %p173 = pneg %p56
        $region18: #{_forward.1} parent=11 // pred_check_branch
          %175 = sbr.rel (%p173) target = $region20
        $region19: #{_forward.1} parent=11 // pred_region
          _
        $region20: #{_forward.1} parent=11 // pred_fallthru
          _
        // Predicated region
        $region21: #{_forward.1} parent=11 // pred_check
          %p176 = pneg %p77
        $region22: #{_forward.1} parent=11 // pred_check_branch
          %178 = sbr.rel (%p176) target = $region24
        $region23: #{_forward.1} parent=11 // pred_region
          _
        $region24: #{_forward.1} parent=11 // pred_fallthru
          _
      $region12: #{_forward.1} parent=5 // pred_fallthru
        _
      %p179 = scmp.lt.s32.totalorder %s14, 2
      // Predicated region
      $region25: #{_forward.1} parent=5 // pred_check
        %p180 = pneg %p179
      $region26: #{_forward.1} parent=5 // pred_check_branch
        %182 = sbr.rel (%p180) target = $region28
      $region27: #{_forward.1} parent=5 // pred_region
        // Predicated region
        $region29: #{_forward.1} parent=27 // pred_check
          %p183 = pneg %p97
        $region30: #{_forward.1} parent=27 // pred_check_branch
          %185 = sbr.rel (%p183) target = $region32
        $region31: #{_forward.1} parent=27 // pred_region
          %s186 = sand.u32 %s87, 1
          %s187 = sand.u32 %s87, 1
          %s188 = smul.addr %s187, 64
          %s189 = scalar_lea.vmem [#allocation2], %s188
          %s190 = smul.addr %s14, 4
          %s191 = scalar_lea.vmem %s3, %s190
          // Predicated region
          $region33: #{_forward.1} parent=31 // pred_check
            _
          $region34: #{_forward.1} parent=31 // pred_check_branch
            %193 = sbr.rel (0) target = $region36
          $region35: #{_forward.1} parent=31 // pred_region
            // Predicated region
            $region37: #{_forward.1} parent=35 // pred_check
              _
            $region38: #{_forward.1} parent=35 // pred_check_branch
              %195 = sbr.rel target = $region40
            $region39: #{_forward.1} parent=35 // pred_region
              // Predicated region
              $region52: #{_forward.1} parent=39 // pred_check
                _
              $region53: #{_forward.1} parent=39 // pred_check_branch
                %240 = sbr.rel (0) target = $region55
              $region54: #{_forward.1} parent=39 // pred_region
                loop: start=0, step=1, limit=1
                $region56: #{_forward.1} parent=54 // loop_pre_header
                  _
                $region57: #{_forward.1} parent=54 // loop_header
                  %s242 = sphi 0, %s246
                  %p243 = scmp.ge.s32.totalorder %s242, 1
                  %s247 = sphi %s191, %s191
                  %s248 = sphi %s189, %s189
                $region58: #{_forward.1} parent=54 // loop_header_branch
                  %245 = sbr.rel (%p243) target = $region62
                $region59: #{_forward.1} parent=54 // loop_body
                  _
                $region60: #{_forward.1} parent=54 // loop_footer
                  %s246 = sadd.s32 1, %s242
                $region61: #{_forward.1} parent=54 // loop_footer_branch
                  %241 = sbr.rel target = $region57
                $region62: #{_forward.1} parent=54 // loop_exit
                  _
                loop: start=0, step=1, limit=1
                $region63: #{_forward.1} parent=54 // loop_pre_header
                  _
                $region64: #{_forward.1} parent=54 // loop_header
                  %s251 = sphi 0, %s255
                  %p252 = scmp.ge.s32.totalorder %s251, 1
                  %s256 = sphi %s191, %s191
                  %s257 = sphi %s189, %s189
                $region65: #{_forward.1} parent=54 // loop_header_branch
                  %254 = sbr.rel (%p252) target = $region69
                $region66: #{_forward.1} parent=54 // loop_body
                  %v258 = vld [vmem:[%s256] sm:$0xf]
                  %259 = vst [vmem:[%s257] sm:$0xf] %v258
                  %v260 = vld [vmem:[%s256 + $0x8] sm:$0xf]
                  %261 = vst [vmem:[%s257 + $0x4] sm:$0xf] %v260
                  %v262 = vld [vmem:[%s256 + $0x10] sm:$0xf]
                  %263 = vst [vmem:[%s257 + $0x8] sm:$0xf] %v262
                  %v264 = vld [vmem:[%s256 + $0x18] sm:$0xf]
                  %265 = vst [vmem:[%s257 + $0xc] sm:$0xf] %v264
                  %v266 = vld [vmem:[%s256 + $0x20] sm:$0xf]
                  %267 = vst [vmem:[%s257 + $0x10] sm:$0xf] %v266
                  %v268 = vld [vmem:[%s256 + $0x28] sm:$0xf]
                  %269 = vst [vmem:[%s257 + $0x14] sm:$0xf] %v268
                  %v270 = vld [vmem:[%s256 + $0x30] sm:$0xf]
                  %271 = vst [vmem:[%s257 + $0x18] sm:$0xf] %v270
                  %v272 = vld [vmem:[%s256 + $0x38] sm:$0xf]
                  %273 = vst [vmem:[%s257 + $0x1c] sm:$0xf] %v272
                  %v274 = vld [vmem:[%s256 + $0x40] sm:$0xf]
                  %275 = vst [vmem:[%s257 + $0x20] sm:$0xf] %v274
                  %v276 = vld [vmem:[%s256 + $0x48] sm:$0xf]
                  %277 = vst [vmem:[%s257 + $0x24] sm:$0xf] %v276
                  %v278 = vld [vmem:[%s256 + $0x50] sm:$0xf]
                  %279 = vst [vmem:[%s257 + $0x28] sm:$0xf] %v278
                  %v280 = vld [vmem:[%s256 + $0x58] sm:$0xf]
                  %281 = vst [vmem:[%s257 + $0x2c] sm:$0xf] %v280
                  %v282 = vld [vmem:[%s256 + $0x60] sm:$0xf]
                  %283 = vst [vmem:[%s257 + $0x30] sm:$0xf] %v282
                  %v284 = vld [vmem:[%s256 + $0x68] sm:$0xf]
                  %285 = vst [vmem:[%s257 + $0x34] sm:$0xf] %v284
                  %v286 = vld [vmem:[%s256 + $0x70] sm:$0xf]
                  %287 = vst [vmem:[%s257 + $0x38] sm:$0xf] %v286
                  %v288 = vld [vmem:[%s256 + $0x78] sm:$0xf]
                  %289 = vst [vmem:[%s257 + $0x3c] sm:$0xf] %v288
                $region67: #{_forward.1} parent=54 // loop_footer
                  %s255 = sadd.s32 1, %s251
                $region68: #{_forward.1} parent=54 // loop_footer_branch
                  %250 = sbr.rel target = $region64
                $region69: #{_forward.1} parent=54 // loop_exit
                  _
              $region55: #{_forward.1} parent=39 // pred_fallthru
                _
            $region40: #{_forward.1} parent=35 // pred_fallthru
              _
            // Predicated region
            $region41: #{_forward.1} parent=35 // pred_check
              _
            $region42: #{_forward.1} parent=35 // pred_check_branch
              %197 = sbr.rel (0) target = $region44
            $region43: #{_forward.1} parent=35 // pred_region
              loop: start=0, step=1, limit=1
              $region45: #{_forward.1} parent=43 // loop_pre_header
                _
              $region46: #{_forward.1} parent=43 // loop_header
                %s200 = sphi 0, %s204
                %p201 = scmp.ge.s32.totalorder %s200, 1
                %s205 = sphi %s191, %s191
                %s206 = sphi %s189, %s189
              $region47: #{_forward.1} parent=43 // loop_header_branch
                %203 = sbr.rel (%p201) target = $region51
              $region48: #{_forward.1} parent=43 // loop_body
                %v207 = vld [vmem:[%s205] sm:$0xf]
                %208 = vst [vmem:[%s206] sm:$0xf] %v207
                %v209 = vld [vmem:[%s205 + $0x8] sm:$0xf]
                %210 = vst [vmem:[%s206 + $0x4] sm:$0xf] %v209
                %v211 = vld [vmem:[%s205 + $0x10] sm:$0xf]
                %212 = vst [vmem:[%s206 + $0x8] sm:$0xf] %v211
                %v213 = vld [vmem:[%s205 + $0x18] sm:$0xf]
                %214 = vst [vmem:[%s206 + $0xc] sm:$0xf] %v213
                %v215 = vld [vmem:[%s205 + $0x20] sm:$0xf]
                %216 = vst [vmem:[%s206 + $0x10] sm:$0xf] %v215
                %v217 = vld [vmem:[%s205 + $0x28] sm:$0xf]
                %218 = vst [vmem:[%s206 + $0x14] sm:$0xf] %v217
                %v219 = vld [vmem:[%s205 + $0x30] sm:$0xf]
                %220 = vst [vmem:[%s206 + $0x18] sm:$0xf] %v219
                %v221 = vld [vmem:[%s205 + $0x38] sm:$0xf]
                %222 = vst [vmem:[%s206 + $0x1c] sm:$0xf] %v221
                %v223 = vld [vmem:[%s205 + $0x40] sm:$0xf]
                %224 = vst [vmem:[%s206 + $0x20] sm:$0xf] %v223
                %v225 = vld [vmem:[%s205 + $0x48] sm:$0xf]
                %226 = vst [vmem:[%s206 + $0x24] sm:$0xf] %v225
                %v227 = vld [vmem:[%s205 + $0x50] sm:$0xf]
                %228 = vst [vmem:[%s206 + $0x28] sm:$0xf] %v227
                %v229 = vld [vmem:[%s205 + $0x58] sm:$0xf]
                %230 = vst [vmem:[%s206 + $0x2c] sm:$0xf] %v229
                %v231 = vld [vmem:[%s205 + $0x60] sm:$0xf]
                %232 = vst [vmem:[%s206 + $0x30] sm:$0xf] %v231
                %v233 = vld [vmem:[%s205 + $0x68] sm:$0xf]
                %234 = vst [vmem:[%s206 + $0x34] sm:$0xf] %v233
                %v235 = vld [vmem:[%s205 + $0x70] sm:$0xf]
                %236 = vst [vmem:[%s206 + $0x38] sm:$0xf] %v235
                %v237 = vld [vmem:[%s205 + $0x78] sm:$0xf]
                %238 = vst [vmem:[%s206 + $0x3c] sm:$0xf] %v237
              $region49: #{_forward.1} parent=43 // loop_footer
                %s204 = sadd.s32 1, %s200
              $region50: #{_forward.1} parent=43 // loop_footer_branch
                %199 = sbr.rel target = $region46
              $region51: #{_forward.1} parent=43 // loop_exit
                _
            $region44: #{_forward.1} parent=35 // pred_fallthru
              _
          $region36: #{_forward.1} parent=31 // pred_fallthru
            _
          %290 = vnop
        $region32: #{_forward.1} parent=27 // pred_fallthru
          _
        // Predicated region
        $region70: #{_forward.1} parent=27 // pred_check
          %p291 = pneg %p123
        $region71: #{_forward.1} parent=27 // pred_check_branch
          %293 = sbr.rel (%p291) target = $region73
        $region72: #{_forward.1} parent=27 // pred_region
          %p294 = scmp.lt.s32.totalorder %s14, 1
          %s295 = scalar_select %p294, %s14, 1
          %s296 = scalar_lea.vmem %s4, %s295
        $region73: #{_forward.1} parent=27 // pred_fallthru
          _
      $region28: #{_forward.1} parent=5 // pred_fallthru
        _
      %p297 = scmp.le.s32.totalorder 1, %s14
      %p298 = scmp.lt.s32.totalorder %s14, 3
      %p299 = pnand %p297, %p298
      %p300 = pneg %p299
      // Predicated region
      $region74: #{_forward.1} parent=5 // pred_check
        _
      $region75: #{_forward.1} parent=5 // pred_check_branch
        %302 = sbr.rel (%p299) target = $region77
      $region76: #{_forward.1} parent=5 // pred_region
        %s303 = ssub.s32 %s14, 1
        %s304 = sand.u32 %s90, 1
        %s305 = sand.u32 %s90, 1
        %s306 = smul.addr %s305, 64
        %s307 = scalar_lea.vmem [#allocation2], %s306
        // Predicated region
        $region78: #{_forward.1} parent=76 // pred_check
          %p308 = pneg %p103
        $region79: #{_forward.1} parent=76 // pred_check_branch
          %310 = sbr.rel (%p308) target = $region81
        $region80: #{_forward.1} parent=76 // pred_region
          _
        $region81: #{_forward.1} parent=76 // pred_fallthru
          _
        %p311 = pneg %p35
        %p312 = pneg %p32
        %p313 = pneg %p56
        %p314 = pneg %p53
        %p315 = pneg %p77
        %p316 = pneg %p74
        %s317 = sand.u32 %s90, 1
        %s318 = sand.u32 %s90, 1
        %s319 = smul.addr %s318, 64
        %s320 = scalar_lea.vmem [#allocation2], %s319
        %p321 = pneg %p103
        %p322 = pneg %p100
        %p323 = scmp.lt.s32.totalorder %s19, 1
        %s324 = scalar_select %p323, %s19, 1
        %s325 = scalar_lea.vmem %s4, %s324
        %p326 = pneg %p129
        %p327 = pneg %p126
        %p328 = pneg %p155
        %p329 = pneg %p152
        %s330 = sand.u32 %s142, 1
        %s331 = scalar_lea.sflag [#allocation4], %s330
        %s332 = sand.u32 %s142, 1
        %s333 = smul.addr %s332, 8
        %s334 = scalar_lea.vmem [#allocation3], %s333
        %p335 = scmp.lt.s32.totalorder %s19, 1
        %s336 = scalar_select %p335, %s19, 1
        %s337 = scalar_lea.vmem %s4, %s336
        %v339 = vld [vmem:[%s0] sm:$0xf]
        %v340 = vld [vmem:[%s1] sm:$0xf]
        %v341 = vld [vmem:[%s1 + $0x4] sm:$0xf]
        %v342 = vld [vmem:[%s1 + $0x8] sm:$0xf]
        %v343 = vld [vmem:[%s1 + $0xc] sm:$0xf]
        %v344 = vld [vmem:[%s1 + $0x10] sm:$0xf]
        %v345 = vld [vmem:[%s1 + $0x14] sm:$0xf]
        %v346 = vld [vmem:[%s1 + $0x18] sm:$0xf]
        %v347 = vld [vmem:[%s1 + $0x1c] sm:$0xf]
        %v348 = vld [vmem:[%s1 + $0x20] sm:$0xf]
        %v349 = vld [vmem:[%s1 + $0x24] sm:$0xf]
        %v350 = vld [vmem:[%s1 + $0x28] sm:$0xf]
        %v351 = vld [vmem:[%s1 + $0x2c] sm:$0xf]
        %v352 = vld [vmem:[%s1 + $0x30] sm:$0xf]
        %v353 = vld [vmem:[%s1 + $0x34] sm:$0xf]
        %v354 = vld [vmem:[%s1 + $0x38] sm:$0xf]
        %v355 = vld [vmem:[%s1 + $0x3c] sm:$0xf]
        %v356 = vld [vmem:[%s2] sm:$0x1]
        %v358 = vlaneseq
        %v359 = vshrl.u32 %v358, 7
        %v360 = vsub.s32 0, %v359
        %v361 = vrot.slane %v356, %v360
        %v379 = vunpack.c.l.b16 %v340
        %v380 = vunpack.c.l.b16 %v341
        %v381 = vunpack.c.l.b16 %v342
        %v382 = vunpack.c.l.b16 %v343
        %v383 = vunpack.c.l.b16 %v344
        %v384 = vunpack.c.l.b16 %v345
        %v385 = vunpack.c.l.b16 %v346
        %v386 = vunpack.c.l.b16 %v347
        %v387 = vunpack.c.l.b16 %v348
        %v388 = vunpack.c.l.b16 %v349
        %v389 = vunpack.c.l.b16 %v350
        %v390 = vunpack.c.l.b16 %v351
        %v391 = vunpack.c.l.b16 %v352
        %v392 = vunpack.c.l.b16 %v353
        %v393 = vunpack.c.l.b16 %v354
        %v394 = vunpack.c.l.b16 %v355
        %v395 = vpack.c.b16 %v380, %v379
        %v396 = vpack.c.b16 %v382, %v381
        %v397 = vpack.c.b16 %v384, %v383
        %v398 = vpack.c.b16 %v386, %v385
        %v399 = vpack.c.b16 %v388, %v387
        %v400 = vpack.c.b16 %v390, %v389
        %v401 = vpack.c.b16 %v392, %v391
        %v402 = vpack.c.b16 %v394, %v393
        %411 = vmatprep.subr.bf16.mxu0 0
        %412 = vmatpush1.bf16.msra.mxu0 %v395
        %413 = vmatprep.subr.bf16.mxu0 0
        %414 = vmatpush1.bf16.msra.mxu0 %v396
        %415 = vmatprep.subr.bf16.mxu0 0
        %416 = vmatpush1.bf16.msra.mxu0 %v397
        %417 = vmatprep.subr.bf16.mxu0 0
        %418 = vmatpush1.bf16.msra.mxu0 %v398
        %419 = vmatprep.subr.bf16.mxu0 0
        %420 = vmatpush1.bf16.msra.mxu0 %v399
        %421 = vmatprep.subr.bf16.mxu0 0
        %422 = vmatpush1.bf16.msra.mxu0 %v400
        %423 = vmatprep.subr.bf16.mxu0 0
        %424 = vmatpush1.bf16.msra.mxu0 %v401
        %425 = vmatprep.subr.bf16.mxu0 0
        %426 = vmatpush1.bf16.msra.mxu0 %v402
        %427 = vmatprep.subr.bf16.mxu0 0
        %428 = vmatpush1.bf16.msra.mxu0 0
        %429 = vmatprep.subr.bf16.mxu0 0
        %430 = vmatpush1.bf16.msra.mxu0 0
        %431 = vmatprep.subr.bf16.mxu0 0
        %432 = vmatpush1.bf16.msra.mxu0 0
        %433 = vmatprep.subr.bf16.mxu0 0
        %434 = vmatpush1.bf16.msra.mxu0 0
        %435 = vmatprep.subr.bf16.mxu0 0
        %436 = vmatpush1.bf16.msra.mxu0 0
        %437 = vmatprep.subr.bf16.mxu0 0
        %438 = vmatpush1.bf16.msra.mxu0 0
        %439 = vmatprep.subr.bf16.mxu0 0
        %440 = vmatpush1.bf16.msra.mxu0 0
        %441 = vmatprep.subr.bf16.mxu0 0
        %442 = vmatpush1.bf16.msra.mxu0 0
        %443 = vmatprep.mubr.bf16.mxu0 0
        %444 = vmatmul.mubr.bf16.gmra.mrb[0].mxu0 %v339
        %v445 = vpop.f32.mrb[0].mxu0
        %v446 = vadd.f32 %v361, %v445
        %v447 = vpop.f32.mrb[0].mxu0
        %v448 = vpop.f32.mrb[0].mxu0
        %v449 = vpop.f32.mrb[0].mxu0
        %450 = vdwg.mxu0
        %v451 = vmax.f32 %v446, 0.0
        %v452 = vpack.c.bf16 %v451, %v451
        %v453 = vld [vmem:[%s307] sm:$0xf]
        %v454 = vld [vmem:[%s307 + $0x4] sm:$0xf]
        %v455 = vld [vmem:[%s307 + $0x8] sm:$0xf]
        %v456 = vld [vmem:[%s307 + $0xc] sm:$0xf]
        %v457 = vld [vmem:[%s307 + $0x10] sm:$0xf]
        %v458 = vld [vmem:[%s307 + $0x14] sm:$0xf]
        %v459 = vld [vmem:[%s307 + $0x18] sm:$0xf]
        %v460 = vld [vmem:[%s307 + $0x1c] sm:$0xf]
        %v461 = vld [vmem:[%s307 + $0x20] sm:$0xf]
        %v462 = vld [vmem:[%s307 + $0x24] sm:$0xf]
        %v463 = vld [vmem:[%s307 + $0x28] sm:$0xf]
        %v464 = vld [vmem:[%s307 + $0x2c] sm:$0xf]
        %v465 = vld [vmem:[%s307 + $0x30] sm:$0xf]
        %v466 = vld [vmem:[%s307 + $0x34] sm:$0xf]
        %v467 = vld [vmem:[%s307 + $0x38] sm:$0xf]
        %v468 = vld [vmem:[%s307 + $0x3c] sm:$0xf]
        %v469 = vld [vmem:[%s337] sm:$0x1]
        %v471 = vlaneseq
        %v472 = vshrl.u32 %v471, 7
        %v473 = vsub.s32 0, %v472
        %v474 = vrot.slane %v469, %v473
        %v492 = vunpack.c.l.b16 %v453
        %v493 = vunpack.c.l.b16 %v454
        %v494 = vunpack.c.l.b16 %v455
        %v495 = vunpack.c.l.b16 %v456
        %v496 = vunpack.c.l.b16 %v457
        %v497 = vunpack.c.l.b16 %v458
        %v498 = vunpack.c.l.b16 %v459
        %v499 = vunpack.c.l.b16 %v460
        %v500 = vunpack.c.l.b16 %v461
        %v501 = vunpack.c.l.b16 %v462
        %v502 = vunpack.c.l.b16 %v463
        %v503 = vunpack.c.l.b16 %v464
        %v504 = vunpack.c.l.b16 %v465
        %v505 = vunpack.c.l.b16 %v466
        %v506 = vunpack.c.l.b16 %v467
        %v507 = vunpack.c.l.b16 %v468
        %v508 = vpack.c.b16 %v493, %v492
        %v509 = vpack.c.b16 %v495, %v494
        %v510 = vpack.c.b16 %v497, %v496
        %v511 = vpack.c.b16 %v499, %v498
        %v512 = vpack.c.b16 %v501, %v500
        %v513 = vpack.c.b16 %v503, %v502
        %v514 = vpack.c.b16 %v505, %v504
        %v515 = vpack.c.b16 %v507, %v506
        %524 = vmatprep.subr.bf16.mxu0 0
        %525 = vmatpush1.bf16.msra.mxu0 %v508
        %526 = vmatprep.subr.bf16.mxu0 0
        %527 = vmatpush1.bf16.msra.mxu0 %v509
        %528 = vmatprep.subr.bf16.mxu0 0
        %529 = vmatpush1.bf16.msra.mxu0 %v510
        %530 = vmatprep.subr.bf16.mxu0 0
        %531 = vmatpush1.bf16.msra.mxu0 %v511
        %532 = vmatprep.subr.bf16.mxu0 0
        %533 = vmatpush1.bf16.msra.mxu0 %v512
        %534 = vmatprep.subr.bf16.mxu0 0
        %535 = vmatpush1.bf16.msra.mxu0 %v513
        %536 = vmatprep.subr.bf16.mxu0 0
        %537 = vmatpush1.bf16.msra.mxu0 %v514
        %538 = vmatprep.subr.bf16.mxu0 0
        %539 = vmatpush1.bf16.msra.mxu0 %v515
        %540 = vmatprep.subr.bf16.mxu0 0
        %541 = vmatpush1.bf16.msra.mxu0 0
        %542 = vmatprep.subr.bf16.mxu0 0
        %543 = vmatpush1.bf16.msra.mxu0 0
        %544 = vmatprep.subr.bf16.mxu0 0
        %545 = vmatpush1.bf16.msra.mxu0 0
        %546 = vmatprep.subr.bf16.mxu0 0
        %547 = vmatpush1.bf16.msra.mxu0 0
        %548 = vmatprep.subr.bf16.mxu0 0
        %549 = vmatpush1.bf16.msra.mxu0 0
        %550 = vmatprep.subr.bf16.mxu0 0
        %551 = vmatpush1.bf16.msra.mxu0 0
        %552 = vmatprep.subr.bf16.mxu0 0
        %553 = vmatpush1.bf16.msra.mxu0 0
        %554 = vmatprep.subr.bf16.mxu0 0
        %555 = vmatpush1.bf16.msra.mxu0 0
        %556 = vmatprep.mubr.bf16.mxu0 0
        %557 = vmatmul.mubr.bf16.gmra.mrb[0].mxu0 %v452
        %v558 = vpop.f32.mrb[0].mxu0
        %v559 = vadd.f32 %v474, %v558
        %v560 = vpop.f32.mrb[0].mxu0
        %v561 = vpop.f32.mrb[0].mxu0
        %v562 = vpop.f32.mrb[0].mxu0
        %563 = vdwg.mxu0
        %564 = vst [vmem:[%s334] sm:$0xff] %v559
        %s565 = sand.u32 %s142, 1
        %s566 = scalar_lea.sflag [#allocation4], %s565
        %s567 = sand.u32 %s142, 1
        %s568 = smul.addr %s567, 8
        %s569 = scalar_lea.vmem [#allocation3], %s568
        // Predicated region
        $region82: #{_forward.1} parent=76 // pred_check
          %p570 = pneg %p152
        $region83: #{_forward.1} parent=76 // pred_check_branch
          %572 = sbr.rel (%p570) target = $region85
        $region84: #{_forward.1} parent=76 // pred_region
          %s574 = ssub.s32 128, 128
          %575 = vsyncadd %s566, %s574
          %s576 = smul.addr %s19, 128
          %s577 = scalar_lea.hbm %s5, %s576
          %s579 = sshll.u32 %s569, 4
          %s580 = int_to_ptr.vmem [resolvable:$true] %s579
          %582 = dma.vmem_to_hbm [thread:$0]  %s580, 128, %s577, %s566
        $region85: #{_forward.1} parent=76 // pred_fallthru
          _
      $region77: #{_forward.1} parent=5 // pred_fallthru
        _
      %p583 = scmp.le.s32.totalorder 2, %s14
      // Predicated region
      $region86: #{_forward.1} parent=5 // pred_check
        %p584 = pneg %p583
      $region87: #{_forward.1} parent=5 // pred_check_branch
        %586 = sbr.rel (%p584) target = $region89
      $region88: #{_forward.1} parent=5 // pred_region
        %s587 = ssub.s32 %s14, 2
        // Predicated region
        $region90: #{_forward.1} parent=88 // pred_check
          %p588 = pneg %p158
        $region91: #{_forward.1} parent=88 // pred_check_branch
          %590 = sbr.rel (%p588) target = $region93
        $region92: #{_forward.1} parent=88 // pred_region
          %s591 = sand.u32 %s143, 1
          %s592 = scalar_lea.sflag [#allocation4], %s591
          %s593 = sand.u32 %s143, 1
          %s594 = smul.addr %s593, 8
          %s595 = scalar_lea.vmem [#allocation3], %s594
          %596 = dma.done %s592, 128
        $region93: #{_forward.1} parent=88 // pred_fallthru
          _
      $region89: #{_forward.1} parent=5 // pred_fallthru
        _
    $region6: #{_forward.1} parent=1 // loop_footer
      %s18 = sadd.s32 1, %s14
    $region7: #{_forward.1} parent=1 // loop_footer_branch
      %13 = sbr.rel target = $region3
    $region8: #{_forward.1} parent=1 // loop_exit
      _
    %597 = vsyncpa [#allocation4], 1
    %s598 = scalar_lea.sflag [#allocation4], 1
    %599 = vsyncpa %s598, 1

</llo_original>
